<compile_context>
chip_gen: v7x
topology: tpu7x:2x2x1
jax: 0.10.0
libtpu: 0.0.40
codegen_flags: <defaults>
</compile_context>

<pallas_src>
import functools

import jax
import jax.numpy as jnp
from jax.experimental import pallas as pl
from jax.experimental.pallas import tpu as pltpu


def _make_kernel(N, Cout, Ho, Wo, eps):
    HoWo = Ho * Wo
    inv_cnt = 1.0 / float(N * HoWo)

    def kernel(x_ref, w_ref, gb_ref, o_ref):
        """Refs:
           x_ref  : (KH*KW*Cin, N*Ho*Wo)  wrapper-built im2col of the dilated+padded input;
                                          rows ordered (kh, kw, c), columns (n, ho, wo).
           w_ref  : (Cout, KH*KW*Cin)     spatially-flipped ConvTranspose2d weight (matmul-ready).
           gb_ref : (Cout, 2)             [:, 0] = BatchNorm gamma, [:, 1] = BatchNorm beta (f32).
           o_ref  : (N*Cout, Ho*Wo)       output == NCHW flattened (lane-dense, f32).
        """
        # ---- transposed conv == ONE MXU matmul, f32 accumulation, lane-dense (Cout, N*Ho*Wo) ----
        acc = jnp.dot(w_ref[...], x_ref[...], preferred_element_type=jnp.float32)
        # (Conv bias intentionally omitted: it is cancelled by the BN mean subtraction below.)

        # ---- BatchNorm2d (training-mode batch statistics), centered two-pass variance, f32 ----
        mean = jnp.sum(acc, axis=1, keepdims=True) * inv_cnt
        cen = acc - mean
        var = jnp.sum(cen * cen, axis=1, keepdims=True) * inv_cnt
        gb = gb_ref[...]
        y = cen * (jax.lax.rsqrt(var + eps) * gb[:, 0:1]) + gb[:, 1:2]

        # ---- ReLU ----
        y = jnp.maximum(y, 0.0)
        # TODO(synk): Dropout is an inference-mode identity (PyTorch's training-mode dropout RNG
        # stream cannot be reproduced); BatchNorm running statistics are not produced/updated.

        # ---- unmasked full-lane stores; (N*Cout, Ho*Wo) is exactly NCHW flattened ----
        for n in range(N):                                     # static, tiny
            o_ref[n * Cout:(n + 1) * Cout, :] = y[:, n * HoWo:(n + 1) * HoWo]

    return kernel


def deconv_block_forward(x_nchw, weight, bias, gamma, beta, *,
                         stride, padding, output_padding, eps=1e-5,
                         matmul_dtype=jnp.float32):
    """weight has the PyTorch ConvTranspose2d layout (Cin, Cout, KH, KW).

    `bias` is accepted for module parity but intentionally unused: BatchNorm with batch
    statistics subtracts the per-channel mean, which cancels any per-channel constant added by
    the conv bias.  Reinstate it if running-stats (eval-mode) BN is ever implemented.
    """
    del bias
    N, Cin, H, W = x_nchw.shape
    Cin_w, Cout, KH, KW = weight.shape
    assert Cin == Cin_w
    s, p, op = stride, padding, output_padding
    Ho = (H - 1) * s - 2 * p + KH + op
    Wo = (W - 1) * s - 2 * p + KW + op
    lo_h, hi_h = KH - 1 - p, KH - 1 - p + op
    lo_w, hi_w = KW - 1 - p, KW - 1 - p + op
    assert min(lo_h, hi_h, lo_w, hi_w) >= 0
    # TODO(synk): padding > kernel_size - 1 would need cropping logic instead of edge padding.

    x = x_nchw.astype(jnp.float32)

    # One fused XLA pad (still NCHW): interior padding == zero-dilation by the stride,
    # edge padding == the equivalent stride-1 conv halo.  No transpose, no scatter.
    x_pad = jax.lax.pad(
        x, jnp.array(0.0, jnp.float32),
        ((0, 0, 0), (0, 0, 0), (lo_h, hi_h, s - 1), (lo_w, hi_w, s - 1)))
    Hp, Wp = x_pad.shape[2], x_pad.shape[3]
    assert Hp - KH + 1 == Ho and Wp - KW + 1 == Wo

    # Full im2col built in the wrapper (one producer fusion under jit), so the kernel is just
    # dot + BN + ReLU.  Rows ordered (kh, kw, c); columns ordered (n, ho, wo).
    windows = [x_pad[:, :, kh:kh + Ho, kw:kw + Wo]
               for kh in range(KH) for kw in range(KW)]           # each (N, Cin, Ho, Wo)
    x_col = jnp.stack(windows, axis=0)                            # (KH*KW, N, Cin, Ho, Wo)
    x_col = x_col.transpose(0, 2, 1, 3, 4).reshape(KH * KW * Cin, N * Ho * Wo)
    x_col = x_col.astype(matmul_dtype)

    # Weight: flip spatially, reorder to (Cout, KH*KW*Cin); columns ordered (kh, kw, c) to
    # match the im2col rows.
    w_mat = jnp.transpose(weight[:, :, ::-1, ::-1], (1, 2, 3, 0))
    w_mat = w_mat.reshape(Cout, KH * KW * Cin).astype(matmul_dtype)

    # Per-channel BN params packed into one operand: one DMA instead of two (three with bias).
    gb = jnp.stack([gamma, beta], axis=1).astype(jnp.float32)     # (Cout, 2)

    kernel = _make_kernel(N, Cout, Ho, Wo, eps)
    out2d = pl.pallas_call(
        kernel,
        out_shape=jax.ShapeDtypeStruct((N * Cout, Ho * Wo), jnp.float32),
        # Problem is tiny: the whole thing lives in VMEM as a single block (no grid).
        in_specs=[pl.BlockSpec(memory_space=pltpu.MemorySpace.VMEM)] * 3,
        out_specs=pl.BlockSpec(memory_space=pltpu.MemorySpace.VMEM),
        compiler_params=pltpu.CompilerParams(vmem_limit_bytes=32 * 1024 * 1024),
    )(x_col, w_mat, gb)

    # (N*Cout, Ho*Wo) is exactly NCHW flattened -> free reshape, no transpose, no extra HBM op.
    return out2d.reshape(N, Cout, Ho, Wo)


def _reference_forward(x, weight, bias, gamma, beta, *,
                       stride, padding, output_padding):
    """Pure-JAX reference (XLA conv, includes the conv bias) for correctness checking."""
    k = weight.shape[-1]
    s, p, op = stride, padding, output_padding
    w_flip = jnp.transpose(weight[:, :, ::-1, ::-1], (1, 0, 2, 3))  # (Cout, Cin, KH, KW)
    y = jax.lax.conv_general_dilated(
        x.astype(jnp.float32), w_flip.astype(jnp.float32),
        window_strides=(1, 1),
        padding=[(k - 1 - p, k - 1 - p + op), (k - 1 - p, k - 1 - p + op)],
        lhs_dilation=(s, s),
        dimension_numbers=('NCHW', 'OIHW', 'NCHW'))
    y = y + bias[None, :, None, None]
    mean = y.mean(axis=(0, 2, 3), keepdims=True)
    var = y.var(axis=(0, 2, 3), keepdims=True)   # biased, like BN training-mode normalization
    y = (y - mean) / jnp.sqrt(var + 1e-5) * gamma[None, :, None, None] \
        + beta[None, :, None, None]
    return jnp.maximum(y, 0.0)


if __name__ == "__main__":
    # deconv_block(in_channels=4, out_channels=8, kernel_size=3, stride=2,
    #              padding=1, output_padding=1, dropout=0.1)
    in_channels, out_channels = 4, 8
    kernel_size, stride, padding, output_padding = 3, 2, 1, 1

    key = jax.random.PRNGKey(0)
    k0, k1, k2, k3, k4 = jax.random.split(key, 5)
    x = jax.random.normal(k0, (2, in_channels, 16, 16), jnp.float32)
    weight = 0.1 * jax.random.normal(
        k1, (in_channels, out_channels, kernel_size, kernel_size), jnp.float32)
    bias = 0.1 * jax.random.normal(k2, (out_channels,), jnp.float32)
    gamma = 1.0 + 0.1 * jax.random.normal(k3, (out_channels,), jnp.float32)
    beta = 0.1 * jax.random.normal(k4, (out_channels,), jnp.float32)

    fwd_f32 = jax.jit(functools.partial(
        deconv_block_forward, stride=stride, padding=padding,
        output_padding=output_padding, matmul_dtype=jnp.float32))
    fwd_bf16 = jax.jit(functools.partial(
        deconv_block_forward, stride=stride, padding=padding,
        output_padding=output_padding, matmul_dtype=jnp.bfloat16))

    # Primary (f32) path: exact parity with the f32 PyTorch forward semantics.
    out = jax.block_until_ready(fwd_f32(x, weight, bias, gamma, beta))
    assert out.shape == (2, out_channels, 32, 32), out.shape

    ref = _reference_forward(x, weight, bias, gamma, beta,
                             stride=stride, padding=padding,
                             output_padding=output_padding)
    max_err = float(jnp.max(jnp.abs(out - ref)))
    assert jnp.allclose(out, ref, atol=1e-3, rtol=1e-3), max_err

    # bf16 matmul-operand path (native MXU rate on v6e/v7x, half the operand bytes); BN/ReLU
    # stay f32.  Tolerance reflects bf16 operand rounding (~2^-9 relative per operand),
    # amplified by ~1/std through the BN normalization.
    out_bf16 = jax.block_until_ready(fwd_bf16(x, weight, bias, gamma, beta))
    max_err_bf16 = float(jnp.max(jnp.abs(out_bf16 - ref)))
    assert max_err_bf16 < 5e-2, max_err_bf16

    print("KERNEL_OK")
</pallas_src>

<mosaic_0001>
module attributes {stable_mosaic.version = 11 : i64} {
  func.func @kernel(%arg0: memref<36x2048xf32, #tpu.memory_space<vmem>>, %arg1: memref<8x36xf32, #tpu.memory_space<vmem>>, %arg2: memref<8x2xf32, #tpu.memory_space<vmem>>, %arg3: memref<16x1024xf32, #tpu.memory_space<vmem>>) attributes {dimension_semantics = [], scalar_prefetch = 0 : i64, scratch_operands = 0 : i64, tpu.core_type = #tpu.core_type<tc>} {
    %c0 = arith.constant 0 : index
    %c0_0 = arith.constant 0 : index
    %0 = vector.load %arg1[%c0, %c0_0] : memref<8x36xf32, #tpu.memory_space<vmem>>, vector<8x36xf32>
    %c0_1 = arith.constant 0 : index
    %c0_2 = arith.constant 0 : index
    %1 = vector.load %arg0[%c0_1, %c0_2] : memref<36x2048xf32, #tpu.memory_space<vmem>>, vector<36x2048xf32>
    %cst = arith.constant dense<0.000000e+00> : vector<8x2048xf32>
    %2 = tpu.matmul %0, %1, %cst {dimension_numbers = #tpu.dot_dimension_numbers<[1], [0], [0], [1], [0, 0, 1, 1], [], []>} : vector<8x36xf32>, vector<36x2048xf32>, vector<8x2048xf32> -> vector<8x2048xf32>
    %cst_3 = arith.constant dense<0.000000e+00> : vector<8xf32>
    %3 = vector.multi_reduction <add>, %2, %cst_3 [1] : vector<8x2048xf32> to vector<8xf32>
    %4 = vector.shape_cast %3 : vector<8xf32> to vector<8x1xf32>
    %cst_4 = arith.constant 4.8828125E-4 : f32
    %5 = vector.broadcast %cst_4 : f32 to vector<8x1xf32>
    %6 = arith.mulf %4, %5 : vector<8x1xf32>
    %7 = vector.broadcast %6 : vector<8x1xf32> to vector<8x2048xf32>
    %8 = arith.subf %2, %7 : vector<8x2048xf32>
    %9 = arith.mulf %8, %8 : vector<8x2048xf32>
    %cst_5 = arith.constant dense<0.000000e+00> : vector<8xf32>
    %10 = vector.multi_reduction <add>, %9, %cst_5 [1] : vector<8x2048xf32> to vector<8xf32>
    %11 = vector.shape_cast %10 : vector<8xf32> to vector<8x1xf32>
    %cst_6 = arith.constant 4.8828125E-4 : f32
    %12 = vector.broadcast %cst_6 : f32 to vector<8x1xf32>
    %13 = arith.mulf %11, %12 : vector<8x1xf32>
    %c0_7 = arith.constant 0 : index
    %c0_8 = arith.constant 0 : index
    %14 = vector.load %arg2[%c0_7, %c0_8] : memref<8x2xf32, #tpu.memory_space<vmem>>, vector<8x2xf32>
    %cst_9 = arith.constant 9.99999974E-6 : f32
    %15 = vector.broadcast %cst_9 : f32 to vector<8x1xf32>
    %16 = arith.addf %13, %15 : vector<8x1xf32>
    %17 = math.rsqrt %16 : vector<8x1xf32>
    %18 = vector.extract_strided_slice %14 {offsets = [0, 0], sizes = [8, 1], strides = [1, 1]} : vector<8x2xf32> to vector<8x1xf32>
    %19 = arith.mulf %17, %18 : vector<8x1xf32>
    %20 = vector.broadcast %19 : vector<8x1xf32> to vector<8x2048xf32>
    %21 = arith.mulf %8, %20 : vector<8x2048xf32>
    %22 = vector.extract_strided_slice %14 {offsets = [0, 1], sizes = [8, 1], strides = [1, 1]} : vector<8x2xf32> to vector<8x1xf32>
    %23 = vector.broadcast %22 : vector<8x1xf32> to vector<8x2048xf32>
    %24 = arith.addf %21, %23 : vector<8x2048xf32>
    %cst_10 = arith.constant 0.000000e+00 : f32
    %25 = vector.broadcast %cst_10 : f32 to vector<8x2048xf32>
    %26 = arith.maximumf %24, %25 : vector<8x2048xf32>
    %27 = vector.extract_strided_slice %26 {offsets = [0, 0], sizes = [8, 1024], strides = [1, 1]} : vector<8x2048xf32> to vector<8x1024xf32>
    %c0_11 = arith.constant 0 : index
    %c0_12 = arith.constant 0 : index
    %28 = vector.load %arg3[%c0_11, %c0_12] : memref<16x1024xf32, #tpu.memory_space<vmem>>, vector<8x1024xf32>
    tpu.vector_store %arg3[%c0_11, %c0_12], %27 {strides = array<i32>} : memref<16x1024xf32, #tpu.memory_space<vmem>>, vector<8x1024xf32>,
    %29 = vector.extract_strided_slice %26 {offsets = [0, 1024], sizes = [8, 1024], strides = [1, 1]} : vector<8x2048xf32> to vector<8x1024xf32>
    %c8 = arith.constant 8 : index
    %c0_13 = arith.constant 0 : index
    %30 = vector.load %arg3[%c8, %c0_13] : memref<16x1024xf32, #tpu.memory_space<vmem>>, vector<8x1024xf32>
    tpu.vector_store %arg3[%c8, %c0_13], %29 {strides = array<i32>} : memref<16x1024xf32, #tpu.memory_space<vmem>>, vector<8x1024xf32>,
    return
  }
}

</mosaic_0001>

<llo_original>
// kernel: deconv_block_forward.1
$region0: #{deconv_block_forward.1}
  #allocation0 [shape = 'u32[]', space=smem, size = 0x4, offset = 0x4, fixed_abs, tag = 'smem constant byte address 0x4 - core index']
  #allocation1 [shape = 'u32[144,128]{1,0:T(1,128)}', space=vmem, size = 0x12000, scoped, tag = 'internal scratch']
  %s0 = inlined_call_operand.vmem [shape: f32[36,2048], index: 0, kind: input, shape index: {}]
  %s1 = inlined_call_operand.vmem [shape: f32[8,36], index: 1, kind: input, shape index: {}]
  %s2 = inlined_call_operand.vmem [shape: f32[8,2], index: 2, kind: input, shape index: {}]
  %s3 = inlined_call_operand.vmem [shape: f32[16,1024], index: 3, kind: output, shape index: {}]
  %s4 = sld [smem:[#allocation0]]
  $region22: #{deconv_block_forward.1} parent=0
    _
  %s6 = ssub.s32 1, %s4
  %s7 = scalar_select 0, %s6, %s4
  // Predicated region
  $region2: #{deconv_block_forward.1} parent=0 // pred_check
    _
  $region3: #{deconv_block_forward.1} parent=0 // pred_check_branch
    %9 = sbr.rel (0) target = $region5
  $region4: #{deconv_block_forward.1} parent=0 // pred_region
    _
  $region5: #{deconv_block_forward.1} parent=0 // pred_fallthru
    _
  // Predicated region
  $region6: #{deconv_block_forward.1} parent=0 // pred_check
    _
  $region7: #{deconv_block_forward.1} parent=0 // pred_check_branch
    %11 = sbr.rel (0) target = $region9
  $region8: #{deconv_block_forward.1} parent=0 // pred_region
    _
  $region9: #{deconv_block_forward.1} parent=0 // pred_fallthru
    _
  // Predicated region
  $region10: #{deconv_block_forward.1} parent=0 // pred_check
    _
  $region11: #{deconv_block_forward.1} parent=0 // pred_check_branch
    %13 = sbr.rel (0) target = $region13
  $region12: #{deconv_block_forward.1} parent=0 // pred_region
    _
  $region13: #{deconv_block_forward.1} parent=0 // pred_fallthru
    _
  %v14 = vld [vmem:[%s1] sm:$0xff]
  %v15 = vld [vmem:[%s0] sm:$0xff]
  %v16 = vld [vmem:[%s0 + $0x8] sm:$0xff]
  %v17 = vld [vmem:[%s0 + $0x10] sm:$0xff]
  %v18 = vld [vmem:[%s0 + $0x18] sm:$0xff]
  %v19 = vld [vmem:[%s0 + $0x20] sm:$0xff]
  %v20 = vld [vmem:[%s0 + $0x28] sm:$0xff]
  %v21 = vld [vmem:[%s0 + $0x30] sm:$0xff]
  %v22 = vld [vmem:[%s0 + $0x38] sm:$0xff]
  %v23 = vld [vmem:[%s0 + $0x40] sm:$0xff]
  %v24 = vld [vmem:[%s0 + $0x48] sm:$0xff]
  %v25 = vld [vmem:[%s0 + $0x50] sm:$0xff]
  %v26 = vld [vmem:[%s0 + $0x58] sm:$0xff]
  %v27 = vld [vmem:[%s0 + $0x60] sm:$0xff]
  %v28 = vld [vmem:[%s0 + $0x68] sm:$0xff]
  %v29 = vld [vmem:[%s0 + $0x70] sm:$0xff]
  %v30 = vld [vmem:[%s0 + $0x78] sm:$0xff]
  %v31 = vld [vmem:[%s0 + $0x80] sm:$0xff]
  %v32 = vld [vmem:[%s0 + $0x88] sm:$0xff]
  %v33 = vld [vmem:[%s0 + $0x90] sm:$0xff]
  %v34 = vld [vmem:[%s0 + $0x98] sm:$0xff]
  %v35 = vld [vmem:[%s0 + $0xa0] sm:$0xff]
  %v36 = vld [vmem:[%s0 + $0xa8] sm:$0xff]
  %v37 = vld [vmem:[%s0 + $0xb0] sm:$0xff]
  %v38 = vld [vmem:[%s0 + $0xb8] sm:$0xff]
  %v39 = vld [vmem:[%s0 + $0xc0] sm:$0xff]
  %v40 = vld [vmem:[%s0 + $0xc8] sm:$0xff]
  %v41 = vld [vmem:[%s0 + $0xd0] sm:$0xff]
  %v42 = vld [vmem:[%s0 + $0xd8] sm:$0xff]
  %v43 = vld [vmem:[%s0 + $0xe0] sm:$0xff]
  %v44 = vld [vmem:[%s0 + $0xe8] sm:$0xff]
  %v45 = vld [vmem:[%s0 + $0xf0] sm:$0xff]
  %v46 = vld [vmem:[%s0 + $0xf8] sm:$0xff]
  %v47 = vld [vmem:[%s0 + $0x100] sm:$0xff]
  %v48 = vld [vmem:[%s0 + $0x108] sm:$0xff]
  %v49 = vld [vmem:[%s0 + $0x110] sm:$0xff]
  %v50 = vld [vmem:[%s0 + $0x118] sm:$0xff]
  %v51 = vld [vmem:[%s0 + $0x120] sm:$0xff]
  %v52 = vld [vmem:[%s0 + $0x128] sm:$0xff]
  %v53 = vld [vmem:[%s0 + $0x130] sm:$0xff]
  %v54 = vld [vmem:[%s0 + $0x138] sm:$0xff]
  %v55 = vld [vmem:[%s0 + $0x140] sm:$0xff]
  %v56 = vld [vmem:[%s0 + $0x148] sm:$0xff]
  %v57 = vld [vmem:[%s0 + $0x150] sm:$0xff]
  %v58 = vld [vmem:[%s0 + $0x158] sm:$0xff]
  %v59 = vld [vmem:[%s0 + $0x160] sm:$0xff]
  %v60 = vld [vmem:[%s0 + $0x168] sm:$0xff]
  %v61 = vld [vmem:[%s0 + $0x170] sm:$0xff]
  %v62 = vld [vmem:[%s0 + $0x178] sm:$0xff]
  %v63 = vld [vmem:[%s0 + $0x180] sm:$0xff]
  %v64 = vld [vmem:[%s0 + $0x188] sm:$0xff]
  %v65 = vld [vmem:[%s0 + $0x190] sm:$0xff]
  %v66 = vld [vmem:[%s0 + $0x198] sm:$0xff]
  %v67 = vld [vmem:[%s0 + $0x1a0] sm:$0xff]
  %v68 = vld [vmem:[%s0 + $0x1a8] sm:$0xff]
  %v69 = vld [vmem:[%s0 + $0x1b0] sm:$0xff]
  %v70 = vld [vmem:[%s0 + $0x1b8] sm:$0xff]
  %v71 = vld [vmem:[%s0 + $0x1c0] sm:$0xff]
  %v72 = vld [vmem:[%s0 + $0x1c8] sm:$0xff]
  %v73 = vld [vmem:[%s0 + $0x1d0] sm:$0xff]
  %v74 = vld [vmem:[%s0 + $0x1d8] sm:$0xff]
  %v75 = vld [vmem:[%s0 + $0x1e0] sm:$0xff]
  %v76 = vld [vmem:[%s0 + $0x1e8] sm:$0xff]
  %v77 = vld [vmem:[%s0 + $0x1f0] sm:$0xff]
  %v78 = vld [vmem:[%s0 + $0x1f8] sm:$0xff]
  %v79 = vld [vmem:[%s0 + $0x200] sm:$0xf]
  %v80 = vld [vmem:[%s0 + $0x208] sm:$0xf]
  %v81 = vld [vmem:[%s0 + $0x210] sm:$0xf]
  %v82 = vld [vmem:[%s0 + $0x218] sm:$0xf]
  %v83 = vld [vmem:[%s0 + $0x220] sm:$0xf]
  %v84 = vld [vmem:[%s0 + $0x228] sm:$0xf]
  %v85 = vld [vmem:[%s0 + $0x230] sm:$0xf]
  %v86 = vld [vmem:[%s0 + $0x238] sm:$0xf]
  %v87 = vld [vmem:[%s0 + $0x240] sm:$0xf]
  %v88 = vld [vmem:[%s0 + $0x248] sm:$0xf]
  %v89 = vld [vmem:[%s0 + $0x250] sm:$0xf]
  %v90 = vld [vmem:[%s0 + $0x258] sm:$0xf]
  %v91 = vld [vmem:[%s0 + $0x260] sm:$0xf]
  %v92 = vld [vmem:[%s0 + $0x268] sm:$0xf]
  %v93 = vld [vmem:[%s0 + $0x270] sm:$0xf]
  %v94 = vld [vmem:[%s0 + $0x278] sm:$0xf]
  %vm95 = vcmask 293888
  %v97 = vsel %vm95, %v14, 0
  %vm99 = vcmask 1043456
  %v101 = vsel %vm99, %v79, 0
  %v104 = vsel %vm99, %v80, 0
  %v107 = vsel %vm99, %v81, 0
  %v110 = vsel %vm99, %v82, 0
  %v113 = vsel %vm99, %v83, 0
  %v116 = vsel %vm99, %v84, 0
  %v119 = vsel %vm99, %v85, 0
  %v122 = vsel %vm99, %v86, 0
  %v125 = vsel %vm99, %v87, 0
  %v128 = vsel %vm99, %v88, 0
  %v131 = vsel %vm99, %v89, 0
  %v134 = vsel %vm99, %v90, 0
  %v137 = vsel %vm99, %v91, 0
  %v140 = vsel %vm99, %v92, 0
  %v143 = vsel %vm99, %v93, 0
  %v146 = vsel %vm99, %v94, 0
  %148 = vmatprep.subr.mxu0 %v16
  %149 = vmatpush1.msra.mxu0 %v15
  %150 = vmatprep.subr.mxu0 %v32
  %151 = vmatpush1.msra.mxu0 %v31
  %152 = vmatprep.subr.mxu0 %v48
  %153 = vmatpush1.msra.mxu0 %v47
  %154 = vmatprep.subr.mxu0 %v64
  %155 = vmatpush1.msra.mxu0 %v63
  %156 = vmatprep.subr.mxu0 %v104
  %157 = vmatpush1.msra.mxu0 %v101
  %158 = vmatprep.subr.mxu0 0.0
  %159 = vmatpush1.msra.mxu0 0.0
  %160 = vmatprep.subr.mxu0 0.0
  %161 = vmatpush1.msra.mxu0 0.0
  %162 = vmatprep.subr.mxu0 0.0
  %163 = vmatpush1.msra.mxu0 0.0
  %164 = vmatprep.subr.mxu0 0.0
  %165 = vmatpush1.msra.mxu0 0.0
  %166 = vmatprep.subr.mxu0 0.0
  %167 = vmatpush1.msra.mxu0 0.0
  %168 = vmatprep.subr.mxu0 0.0
  %169 = vmatpush1.msra.mxu0 0.0
  %170 = vmatprep.subr.mxu0 0.0
  %171 = vmatpush1.msra.mxu0 0.0
  %172 = vmatprep.subr.mxu0 0.0
  %173 = vmatpush1.msra.mxu0 0.0
  %174 = vmatprep.subr.mxu0 0.0
  %175 = vmatpush1.msra.mxu0 0.0
  %176 = vmatprep.subr.mxu0 0.0
  %177 = vmatpush1.msra.mxu0 0.0
  %178 = vmatprep.subr.mxu0 0.0
  %179 = vmatpush1.msra.mxu0 0.0
  %180 = vmatprep.subr.mxu0 0.0
  %181 = vmatpush1.msra.mxu0 0.0
  %182 = vmatprep.subr.mxu0 0.0
  %183 = vmatpush1.msra.mxu0 0.0
  %184 = vmatprep.subr.mxu0 0.0
  %185 = vmatpush1.msra.mxu0 0.0
  %186 = vmatprep.subr.mxu0 0.0
  %187 = vmatpush1.msra.mxu0 0.0
  %188 = vmatprep.subr.mxu0 0.0
  %189 = vmatpush1.msra.mxu0 0.0
  %190 = vmatprep.subr.mxu0 0.0
  %191 = vmatpush1.msra.mxu0 0.0
  %192 = vmatprep.subr.mxu0 0.0
  %193 = vmatpush1.msra.mxu0 0.0
  %194 = vmatprep.subr.mxu0 0.0
  %195 = vmatpush1.msra.mxu0 0.0
  %196 = vmatprep.subr.mxu0 0.0
  %197 = vmatpush1.msra.mxu0 0.0
  %198 = vmatprep.subr.mxu0 0.0
  %199 = vmatpush1.msra.mxu0 0.0
  %200 = vmatprep.subr.mxu0 0.0
  %201 = vmatpush1.msra.mxu0 0.0
  %202 = vmatprep.subr.mxu0 0.0
  %203 = vmatpush1.msra.mxu0 0.0
  %204 = vmatprep.subr.mxu0 0.0
  %205 = vmatpush1.msra.mxu0 0.0
  %206 = vmatprep.subr.mxu0 0.0
  %207 = vmatpush1.msra.mxu0 0.0
  %208 = vmatprep.subr.mxu0 0.0
  %209 = vmatpush1.msra.mxu0 0.0
  %210 = vmatprep.subr.mxu0 0.0
  %211 = vmatpush1.msra.mxu0 0.0
  %212 = vmatprep.mubr.f32.mxu0 0.0
  %213 = vmatmul.mubr.f32.gmra.mrb[0].mxu0 %v97
  %v214 = vpop.f32.mrb[0].mxu0
  %v215 = vadd.f32 0.0, %v214
  %v216 = vpop.f32.mrb[0].mxu0
  %v217 = vadd.f32 0.0, %v216
  %218 = vdwg.mxu0
  %219 = vmatprep.subr.mxu0 %v18
  %220 = vmatpush1.msra.mxu0 %v17
  %221 = vmatprep.subr.mxu0 %v34
  %222 = vmatpush1.msra.mxu0 %v33
  %223 = vmatprep.subr.mxu0 %v50
  %224 = vmatpush1.msra.mxu0 %v49
  %225 = vmatprep.subr.mxu0 %v66
  %226 = vmatpush1.msra.mxu0 %v65
  %227 = vmatprep.subr.mxu0 %v110
  %228 = vmatpush1.msra.mxu0 %v107
  %229 = vmatprep.subr.mxu0 0.0
  %230 = vmatpush1.msra.mxu0 0.0
  %231 = vmatprep.subr.mxu0 0.0
  %232 = vmatpush1.msra.mxu0 0.0
  %233 = vmatprep.subr.mxu0 0.0
  %234 = vmatpush1.msra.mxu0 0.0
  %235 = vmatprep.subr.mxu0 0.0
  %236 = vmatpush1.msra.mxu0 0.0
  %237 = vmatprep.subr.mxu0 0.0
  %238 = vmatpush1.msra.mxu0 0.0
  %239 = vmatprep.subr.mxu0 0.0
  %240 = vmatpush1.msra.mxu0 0.0
  %241 = vmatprep.subr.mxu0 0.0
  %242 = vmatpush1.msra.mxu0 0.0
  %243 = vmatprep.subr.mxu0 0.0
  %244 = vmatpush1.msra.mxu0 0.0
  %245 = vmatprep.subr.mxu0 0.0
  %246 = vmatpush1.msra.mxu0 0.0
  %247 = vmatprep.subr.mxu0 0.0
  %248 = vmatpush1.msra.mxu0 0.0
  %249 = vmatprep.subr.mxu0 0.0
  %250 = vmatpush1.msra.mxu0 0.0
  %251 = vmatprep.subr.mxu0 0.0
  %252 = vmatpush1.msra.mxu0 0.0
  %253 = vmatprep.subr.mxu0 0.0
  %254 = vmatpush1.msra.mxu0 0.0
  %255 = vmatprep.subr.mxu0 0.0
  %256 = vmatpush1.msra.mxu0 0.0
  %257 = vmatprep.subr.mxu0 0.0
  %258 = vmatpush1.msra.mxu0 0.0
  %259 = vmatprep.subr.mxu0 0.0
  %260 = vmatpush1.msra.mxu0 0.0
  %261 = vmatprep.subr.mxu0 0.0
  %262 = vmatpush1.msra.mxu0 0.0
  %263 = vmatprep.subr.mxu0 0.0
  %264 = vmatpush1.msra.mxu0 0.0
  %265 = vmatprep.subr.mxu0 0.0
  %266 = vmatpush1.msra.mxu0 0.0
  %267 = vmatprep.subr.mxu0 0.0
  %268 = vmatpush1.msra.mxu0 0.0
  %269 = vmatprep.subr.mxu0 0.0
  %270 = vmatpush1.msra.mxu0 0.0
  %271 = vmatprep.subr.mxu0 0.0
  %272 = vmatpush1.msra.mxu0 0.0
  %273 = vmatprep.subr.mxu0 0.0
  %274 = vmatpush1.msra.mxu0 0.0
  %275 = vmatprep.subr.mxu0 0.0
  %276 = vmatpush1.msra.mxu0 0.0
  %277 = vmatprep.subr.mxu0 0.0
  %278 = vmatpush1.msra.mxu0 0.0
  %279 = vmatprep.subr.mxu0 0.0
  %280 = vmatpush1.msra.mxu0 0.0
  %281 = vmatprep.subr.mxu0 0.0
  %282 = vmatpush1.msra.mxu0 0.0
  %283 = vmatprep.mubr.f32.mxu0 0.0
  %284 = vmatmul.mubr.f32.gmra.mrb[0].mxu0 %v97
  %v285 = vpop.f32.mrb[0].mxu0
  %v286 = vadd.f32 0.0, %v285
  %v287 = vpop.f32.mrb[0].mxu0
  %v288 = vadd.f32 0.0, %v287
  %289 = vdwg.mxu0
  %290 = vmatprep.subr.mxu0 %v20
  %291 = vmatpush1.msra.mxu0 %v19
  %292 = vmatprep.subr.mxu0 %v36
  %293 = vmatpush1.msra.mxu0 %v35
  %294 = vmatprep.subr.mxu0 %v52
  %295 = vmatpush1.msra.mxu0 %v51
  %296 = vmatprep.subr.mxu0 %v68
  %297 = vmatpush1.msra.mxu0 %v67
  %298 = vmatprep.subr.mxu0 %v116
  %299 = vmatpush1.msra.mxu0 %v113
  %300 = vmatprep.subr.mxu0 0.0
  %301 = vmatpush1.msra.mxu0 0.0
  %302 = vmatprep.subr.mxu0 0.0
  %303 = vmatpush1.msra.mxu0 0.0
  %304 = vmatprep.subr.mxu0 0.0
  %305 = vmatpush1.msra.mxu0 0.0
  %306 = vmatprep.subr.mxu0 0.0
  %307 = vmatpush1.msra.mxu0 0.0
  %308 = vmatprep.subr.mxu0 0.0
  %309 = vmatpush1.msra.mxu0 0.0
  %310 = vmatprep.subr.mxu0 0.0
  %311 = vmatpush1.msra.mxu0 0.0
  %312 = vmatprep.subr.mxu0 0.0
  %313 = vmatpush1.msra.mxu0 0.0
  %314 = vmatprep.subr.mxu0 0.0
  %315 = vmatpush1.msra.mxu0 0.0
  %316 = vmatprep.subr.mxu0 0.0
  %317 = vmatpush1.msra.mxu0 0.0
  %318 = vmatprep.subr.mxu0 0.0
  %319 = vmatpush1.msra.mxu0 0.0
  %320 = vmatprep.subr.mxu0 0.0
  %321 = vmatpush1.msra.mxu0 0.0
  %322 = vmatprep.subr.mxu0 0.0
  %323 = vmatpush1.msra.mxu0 0.0
  %324 = vmatprep.subr.mxu0 0.0
  %325 = vmatpush1.msra.mxu0 0.0
  %326 = vmatprep.subr.mxu0 0.0
  %327 = vmatpush1.msra.mxu0 0.0
  %328 = vmatprep.subr.mxu0 0.0
  %329 = vmatpush1.msra.mxu0 0.0
  %330 = vmatprep.subr.mxu0 0.0
  %331 = vmatpush1.msra.mxu0 0.0
  %332 = vmatprep.subr.mxu0 0.0
  %333 = vmatpush1.msra.mxu0 0.0
  %334 = vmatprep.subr.mxu0 0.0
  %335 = vmatpush1.msra.mxu0 0.0
  %336 = vmatprep.subr.mxu0 0.0
  %337 = vmatpush1.msra.mxu0 0.0
  %338 = vmatprep.subr.mxu0 0.0
  %339 = vmatpush1.msra.mxu0 0.0
  %340 = vmatprep.subr.mxu0 0.0
  %341 = vmatpush1.msra.mxu0 0.0
  %342 = vmatprep.subr.mxu0 0.0
  %343 = vmatpush1.msra.mxu0 0.0
  %344 = vmatprep.subr.mxu0 0.0
  %345 = vmatpush1.msra.mxu0 0.0
  %346 = vmatprep.subr.mxu0 0.0
  %347 = vmatpush1.msra.mxu0 0.0
  %348 = vmatprep.subr.mxu0 0.0
  %349 = vmatpush1.msra.mxu0 0.0
  %350 = vmatprep.subr.mxu0 0.0
  %351 = vmatpush1.msra.mxu0 0.0
  %352 = vmatprep.subr.mxu0 0.0
  %353 = vmatpush1.msra.mxu0 0.0
  %354 = vmatprep.mubr.f32.mxu0 0.0
  %355 = vmatmul.mubr.f32.gmra.mrb[0].mxu0 %v97
  %v356 = vpop.f32.mrb[0].mxu0
  %v357 = vadd.f32 0.0, %v356
  %v358 = vpop.f32.mrb[0].mxu0
  %v359 = vadd.f32 0.0, %v358
  %360 = vdwg.mxu0
  %361 = vmatprep.subr.mxu0 %v22
  %362 = vmatpush1.msra.mxu0 %v21
  %363 = vmatprep.subr.mxu0 %v38
  %364 = vmatpush1.msra.mxu0 %v37
  %365 = vmatprep.subr.mxu0 %v54
  %366 = vmatpush1.msra.mxu0 %v53
  %367 = vmatprep.subr.mxu0 %v70
  %368 = vmatpush1.msra.mxu0 %v69
  %369 = vmatprep.subr.mxu0 %v122
  %370 = vmatpush1.msra.mxu0 %v119
  %371 = vmatprep.subr.mxu0 0.0
  %372 = vmatpush1.msra.mxu0 0.0
  %373 = vmatprep.subr.mxu0 0.0
  %374 = vmatpush1.msra.mxu0 0.0
  %375 = vmatprep.subr.mxu0 0.0
  %376 = vmatpush1.msra.mxu0 0.0
  %377 = vmatprep.subr.mxu0 0.0
  %378 = vmatpush1.msra.mxu0 0.0
  %379 = vmatprep.subr.mxu0 0.0
  %380 = vmatpush1.msra.mxu0 0.0
  %381 = vmatprep.subr.mxu0 0.0
  %382 = vmatpush1.msra.mxu0 0.0
  %383 = vmatprep.subr.mxu0 0.0
  %384 = vmatpush1.msra.mxu0 0.0
  %385 = vmatprep.subr.mxu0 0.0
  %386 = vmatpush1.msra.mxu0 0.0
  %387 = vmatprep.subr.mxu0 0.0
  %388 = vmatpush1.msra.mxu0 0.0
  %389 = vmatprep.subr.mxu0 0.0
  %390 = vmatpush1.msra.mxu0 0.0
  %391 = vmatprep.subr.mxu0 0.0
  %392 = vmatpush1.msra.mxu0 0.0
  %393 = vmatprep.subr.mxu0 0.0
  %394 = vmatpush1.msra.mxu0 0.0
  %395 = vmatprep.subr.mxu0 0.0
  %396 = vmatpush1.msra.mxu0 0.0
  %397 = vmatprep.subr.mxu0 0.0
  %398 = vmatpush1.msra.mxu0 0.0
  %399 = vmatprep.subr.mxu0 0.0
  %400 = vmatpush1.msra.mxu0 0.0
  %401 = vmatprep.subr.mxu0 0.0
  %402 = vmatpush1.msra.mxu0 0.0
  %403 = vmatprep.subr.mxu0 0.0
  %404 = vmatpush1.msra.mxu0 0.0
  %405 = vmatprep.subr.mxu0 0.0
  %406 = vmatpush1.msra.mxu0 0.0
  %407 = vmatprep.subr.mxu0 0.0
  %408 = vmatpush1.msra.mxu0 0.0
  %409 = vmatprep.subr.mxu0 0.0
  %410 = vmatpush1.msra.mxu0 0.0
  %411 = vmatprep.subr.mxu0 0.0
  %412 = vmatpush1.msra.mxu0 0.0
  %413 = vmatprep.subr.mxu0 0.0
  %414 = vmatpush1.msra.mxu0 0.0
  %415 = vmatprep.subr.mxu0 0.0
  %416 = vmatpush1.msra.mxu0 0.0
  %417 = vmatprep.subr.mxu0 0.0
  %418 = vmatpush1.msra.mxu0 0.0
  %419 = vmatprep.subr.mxu0 0.0
  %420 = vmatpush1.msra.mxu0 0.0
  %421 = vmatprep.subr.mxu0 0.0
  %422 = vmatpush1.msra.mxu0 0.0
  %423 = vmatprep.subr.mxu0 0.0
  %424 = vmatpush1.msra.mxu0 0.0
  %425 = vmatprep.mubr.f32.mxu0 0.0
  %426 = vmatmul.mubr.f32.gmra.mrb[0].mxu0 %v97
  %v427 = vpop.f32.mrb[0].mxu0
  %v428 = vadd.f32 0.0, %v427
  %v429 = vpop.f32.mrb[0].mxu0
  %v430 = vadd.f32 0.0, %v429
  %431 = vdwg.mxu0
  %432 = vmatprep.subr.mxu0 %v24
  %433 = vmatpush1.msra.mxu0 %v23
  %434 = vmatprep.subr.mxu0 %v40
  %435 = vmatpush1.msra.mxu0 %v39
  %436 = vmatprep.subr.mxu0 %v56
  %437 = vmatpush1.msra.mxu0 %v55
  %438 = vmatprep.subr.mxu0 %v72
  %439 = vmatpush1.msra.mxu0 %v71
  %440 = vmatprep.subr.mxu0 %v128
  %441 = vmatpush1.msra.mxu0 %v125
  %442 = vmatprep.subr.mxu0 0.0
  %443 = vmatpush1.msra.mxu0 0.0
  %444 = vmatprep.subr.mxu0 0.0
  %445 = vmatpush1.msra.mxu0 0.0
  %446 = vmatprep.subr.mxu0 0.0
  %447 = vmatpush1.msra.mxu0 0.0
  %448 = vmatprep.subr.mxu0 0.0
  %449 = vmatpush1.msra.mxu0 0.0
  %450 = vmatprep.subr.mxu0 0.0
  %451 = vmatpush1.msra.mxu0 0.0
  %452 = vmatprep.subr.mxu0 0.0
  %453 = vmatpush1.msra.mxu0 0.0
  %454 = vmatprep.subr.mxu0 0.0
  %455 = vmatpush1.msra.mxu0 0.0
  %456 = vmatprep.subr.mxu0 0.0
  %457 = vmatpush1.msra.mxu0 0.0
  %458 = vmatprep.subr.mxu0 0.0
  %459 = vmatpush1.msra.mxu0 0.0
  %460 = vmatprep.subr.mxu0 0.0
  %461 = vmatpush1.msra.mxu0 0.0
  %462 = vmatprep.subr.mxu0 0.0
  %463 = vmatpush1.msra.mxu0 0.0
  %464 = vmatprep.subr.mxu0 0.0
  %465 = vmatpush1.msra.mxu0 0.0
  %466 = vmatprep.subr.mxu0 0.0
  %467 = vmatpush1.msra.mxu0 0.0
  %468 = vmatprep.subr.mxu0 0.0
  %469 = vmatpush1.msra.mxu0 0.0
  %470 = vmatprep.subr.mxu0 0.0
  %471 = vmatpush1.msra.mxu0 0.0
  %472 = vmatprep.subr.mxu0 0.0
  %473 = vmatpush1.msra.mxu0 0.0
  %474 = vmatprep.subr.mxu0 0.0
  %475 = vmatpush1.msra.mxu0 0.0
  %476 = vmatprep.subr.mxu0 0.0
  %477 = vmatpush1.msra.mxu0 0.0
  %478 = vmatprep.subr.mxu0 0.0
  %479 = vmatpush1.msra.mxu0 0.0
  %480 = vmatprep.subr.mxu0 0.0
  %481 = vmatpush1.msra.mxu0 0.0
  %482 = vmatprep.subr.mxu0 0.0
  %483 = vmatpush1.msra.mxu0 0.0
  %484 = vmatprep.subr.mxu0 0.0
  %485 = vmatpush1.msra.mxu0 0.0
  %486 = vmatprep.subr.mxu0 0.0
  %487 = vmatpush1.msra.mxu0 0.0
  %488 = vmatprep.subr.mxu0 0.0
  %489 = vmatpush1.msra.mxu0 0.0
  %490 = vmatprep.subr.mxu0 0.0
  %491 = vmatpush1.msra.mxu0 0.0
  %492 = vmatprep.subr.mxu0 0.0
  %493 = vmatpush1.msra.mxu0 0.0
  %494 = vmatprep.subr.mxu0 0.0
  %495 = vmatpush1.msra.mxu0 0.0
  %496 = vmatprep.mubr.f32.mxu0 0.0
  %497 = vmatmul.mubr.f32.gmra.mrb[0].mxu0 %v97
  %v498 = vpop.f32.mrb[0].mxu0
  %v499 = vadd.f32 0.0, %v498
  %v500 = vpop.f32.mrb[0].mxu0
  %v501 = vadd.f32 0.0, %v500
  %502 = vdwg.mxu0
  %503 = vmatprep.subr.mxu0 %v26
  %504 = vmatpush1.msra.mxu0 %v25
  %505 = vmatprep.subr.mxu0 %v42
  %506 = vmatpush1.msra.mxu0 %v41
  %507 = vmatprep.subr.mxu0 %v58
  %508 = vmatpush1.msra.mxu0 %v57
  %509 = vmatprep.subr.mxu0 %v74
  %510 = vmatpush1.msra.mxu0 %v73
  %511 = vmatprep.subr.mxu0 %v134
  %512 = vmatpush1.msra.mxu0 %v131
  %513 = vmatprep.subr.mxu0 0.0
  %514 = vmatpush1.msra.mxu0 0.0
  %515 = vmatprep.subr.mxu0 0.0
  %516 = vmatpush1.msra.mxu0 0.0
  %517 = vmatprep.subr.mxu0 0.0
  %518 = vmatpush1.msra.mxu0 0.0
  %519 = vmatprep.subr.mxu0 0.0
  %520 = vmatpush1.msra.mxu0 0.0
  %521 = vmatprep.subr.mxu0 0.0
  %522 = vmatpush1.msra.mxu0 0.0
  %523 = vmatprep.subr.mxu0 0.0
  %524 = vmatpush1.msra.mxu0 0.0
  %525 = vmatprep.subr.mxu0 0.0
  %526 = vmatpush1.msra.mxu0 0.0
  %527 = vmatprep.subr.mxu0 0.0
  %528 = vmatpush1.msra.mxu0 0.0
  %529 = vmatprep.subr.mxu0 0.0
  %530 = vmatpush1.msra.mxu0 0.0
  %531 = vmatprep.subr.mxu0 0.0
  %532 = vmatpush1.msra.mxu0 0.0
  %533 = vmatprep.subr.mxu0 0.0
  %534 = vmatpush1.msra.mxu0 0.0
  %535 = vmatprep.subr.mxu0 0.0
  %536 = vmatpush1.msra.mxu0 0.0
  %537 = vmatprep.subr.mxu0 0.0
  %538 = vmatpush1.msra.mxu0 0.0
  %539 = vmatprep.subr.mxu0 0.0
  %540 = vmatpush1.msra.mxu0 0.0
  %541 = vmatprep.subr.mxu0 0.0
  %542 = vmatpush1.msra.mxu0 0.0
  %543 = vmatprep.subr.mxu0 0.0
  %544 = vmatpush1.msra.mxu0 0.0
  %545 = vmatprep.subr.mxu0 0.0
  %546 = vmatpush1.msra.mxu0 0.0
  %547 = vmatprep.subr.mxu0 0.0
  %548 = vmatpush1.msra.mxu0 0.0
  %549 = vmatprep.subr.mxu0 0.0
  %550 = vmatpush1.msra.mxu0 0.0
  %551 = vmatprep.subr.mxu0 0.0
  %552 = vmatpush1.msra.mxu0 0.0
  %553 = vmatprep.subr.mxu0 0.0
  %554 = vmatpush1.msra.mxu0 0.0
  %555 = vmatprep.subr.mxu0 0.0
  %556 = vmatpush1.msra.mxu0 0.0
  %557 = vmatprep.subr.mxu0 0.0
  %558 = vmatpush1.msra.mxu0 0.0
  %559 = vmatprep.subr.mxu0 0.0
  %560 = vmatpush1.msra.mxu0 0.0
  %561 = vmatprep.subr.mxu0 0.0
  %562 = vmatpush1.msra.mxu0 0.0
  %563 = vmatprep.subr.mxu0 0.0
  %564 = vmatpush1.msra.mxu0 0.0
  %565 = vmatprep.subr.mxu0 0.0
  %566 = vmatpush1.msra.mxu0 0.0
  %567 = vmatprep.mubr.f32.mxu0 0.0
  %568 = vmatmul.mubr.f32.gmra.mrb[0].mxu0 %v97
  %v569 = vpop.f32.mrb[0].mxu0
  %v570 = vadd.f32 0.0, %v569
  %v571 = vpop.f32.mrb[0].mxu0
  %v572 = vadd.f32 0.0, %v571
  %573 = vdwg.mxu0
  %574 = vmatprep.subr.mxu0 %v28
  %575 = vmatpush1.msra.mxu0 %v27
  %576 = vmatprep.subr.mxu0 %v44
  %577 = vmatpush1.msra.mxu0 %v43
  %578 = vmatprep.subr.mxu0 %v60
  %579 = vmatpush1.msra.mxu0 %v59
  %580 = vmatprep.subr.mxu0 %v76
  %581 = vmatpush1.msra.mxu0 %v75
  %582 = vmatprep.subr.mxu0 %v140
  %583 = vmatpush1.msra.mxu0 %v137
  %584 = vmatprep.subr.mxu0 0.0
  %585 = vmatpush1.msra.mxu0 0.0
  %586 = vmatprep.subr.mxu0 0.0
  %587 = vmatpush1.msra.mxu0 0.0
  %588 = vmatprep.subr.mxu0 0.0
  %589 = vmatpush1.msra.mxu0 0.0
  %590 = vmatprep.subr.mxu0 0.0
  %591 = vmatpush1.msra.mxu0 0.0
  %592 = vmatprep.subr.mxu0 0.0
  %593 = vmatpush1.msra.mxu0 0.0
  %594 = vmatprep.subr.mxu0 0.0
  %595 = vmatpush1.msra.mxu0 0.0
  %596 = vmatprep.subr.mxu0 0.0
  %597 = vmatpush1.msra.mxu0 0.0
  %598 = vmatprep.subr.mxu0 0.0
  %599 = vmatpush1.msra.mxu0 0.0
  %600 = vmatprep.subr.mxu0 0.0
  %601 = vmatpush1.msra.mxu0 0.0
  %602 = vmatprep.subr.mxu0 0.0
  %603 = vmatpush1.msra.mxu0 0.0
  %604 = vmatprep.subr.mxu0 0.0
  %605 = vmatpush1.msra.mxu0 0.0
  %606 = vmatprep.subr.mxu0 0.0
  %607 = vmatpush1.msra.mxu0 0.0
  %608 = vmatprep.subr.mxu0 0.0
  %609 = vmatpush1.msra.mxu0 0.0
  %610 = vmatprep.subr.mxu0 0.0
  %611 = vmatpush1.msra.mxu0 0.0
  %612 = vmatprep.subr.mxu0 0.0
  %613 = vmatpush1.msra.mxu0 0.0
  %614 = vmatprep.subr.mxu0 0.0
  %615 = vmatpush1.msra.mxu0 0.0
  %616 = vmatprep.subr.mxu0 0.0
  %617 = vmatpush1.msra.mxu0 0.0
  %618 = vmatprep.subr.mxu0 0.0
  %619 = vmatpush1.msra.mxu0 0.0
  %620 = vmatprep.subr.mxu0 0.0
  %621 = vmatpush1.msra.mxu0 0.0
  %622 = vmatprep.subr.mxu0 0.0
  %623 = vmatpush1.msra.mxu0 0.0
  %624 = vmatprep.subr.mxu0 0.0
  %625 = vmatpush1.msra.mxu0 0.0
  %626 = vmatprep.subr.mxu0 0.0
  %627 = vmatpush1.msra.mxu0 0.0
  %628 = vmatprep.subr.mxu0 0.0
  %629 = vmatpush1.msra.mxu0 0.0
  %630 = vmatprep.subr.mxu0 0.0
  %631 = vmatpush1.msra.mxu0 0.0
  %632 = vmatprep.subr.mxu0 0.0
  %633 = vmatpush1.msra.mxu0 0.0
  %634 = vmatprep.subr.mxu0 0.0
  %635 = vmatpush1.msra.mxu0 0.0
  %636 = vmatprep.subr.mxu0 0.0
  %637 = vmatpush1.msra.mxu0 0.0
  %638 = vmatprep.mubr.f32.mxu0 0.0
  %639 = vmatmul.mubr.f32.gmra.mrb[0].mxu0 %v97
  %v640 = vpop.f32.mrb[0].mxu0
  %v641 = vadd.f32 0.0, %v640
  %v642 = vpop.f32.mrb[0].mxu0
  %v643 = vadd.f32 0.0, %v642
  %644 = vdwg.mxu0
  %645 = vmatprep.subr.mxu0 %v30
  %646 = vmatpush1.msra.mxu0 %v29
  %647 = vmatprep.subr.mxu0 %v46
  %648 = vmatpush1.msra.mxu0 %v45
  %649 = vmatprep.subr.mxu0 %v62
  %650 = vmatpush1.msra.mxu0 %v61
  %651 = vmatprep.subr.mxu0 %v78
  %652 = vmatpush1.msra.mxu0 %v77
  %653 = vmatprep.subr.mxu0 %v146
  %654 = vmatpush1.msra.mxu0 %v143
  %655 = vmatprep.subr.mxu0 0.0
  %656 = vmatpush1.msra.mxu0 0.0
  %657 = vmatprep.subr.mxu0 0.0
  %658 = vmatpush1.msra.mxu0 0.0
  %659 = vmatprep.subr.mxu0 0.0
  %660 = vmatpush1.msra.mxu0 0.0
  %661 = vmatprep.subr.mxu0 0.0
  %662 = vmatpush1.msra.mxu0 0.0
  %663 = vmatprep.subr.mxu0 0.0
  %664 = vmatpush1.msra.mxu0 0.0
  %665 = vmatprep.subr.mxu0 0.0
  %666 = vmatpush1.msra.mxu0 0.0
  %667 = vmatprep.subr.mxu0 0.0
  %668 = vmatpush1.msra.mxu0 0.0
  %669 = vmatprep.subr.mxu0 0.0
  %670 = vmatpush1.msra.mxu0 0.0
  %671 = vmatprep.subr.mxu0 0.0
  %672 = vmatpush1.msra.mxu0 0.0
  %673 = vmatprep.subr.mxu0 0.0
  %674 = vmatpush1.msra.mxu0 0.0
  %675 = vmatprep.subr.mxu0 0.0
  %676 = vmatpush1.msra.mxu0 0.0
  %677 = vmatprep.subr.mxu0 0.0
  %678 = vmatpush1.msra.mxu0 0.0
  %679 = vmatprep.subr.mxu0 0.0
  %680 = vmatpush1.msra.mxu0 0.0
  %681 = vmatprep.subr.mxu0 0.0
  %682 = vmatpush1.msra.mxu0 0.0
  %683 = vmatprep.subr.mxu0 0.0
  %684 = vmatpush1.msra.mxu0 0.0
  %685 = vmatprep.subr.mxu0 0.0
  %686 = vmatpush1.msra.mxu0 0.0
  %687 = vmatprep.subr.mxu0 0.0
  %688 = vmatpush1.msra.mxu0 0.0
  %689 = vmatprep.subr.mxu0 0.0
  %690 = vmatpush1.msra.mxu0 0.0
  %691 = vmatprep.subr.mxu0 0.0
  %692 = vmatpush1.msra.mxu0 0.0
  %693 = vmatprep.subr.mxu0 0.0
  %694 = vmatpush1.msra.mxu0 0.0
  %695 = vmatprep.subr.mxu0 0.0
  %696 = vmatpush1.msra.mxu0 0.0
  %697 = vmatprep.subr.mxu0 0.0
  %698 = vmatpush1.msra.mxu0 0.0
  %699 = vmatprep.subr.mxu0 0.0
  %700 = vmatpush1.msra.mxu0 0.0
  %701 = vmatprep.subr.mxu0 0.0
  %702 = vmatpush1.msra.mxu0 0.0
  %703 = vmatprep.subr.mxu0 0.0
  %704 = vmatpush1.msra.mxu0 0.0
  %705 = vmatprep.subr.mxu0 0.0
  %706 = vmatpush1.msra.mxu0 0.0
  %707 = vmatprep.subr.mxu0 0.0
  %708 = vmatpush1.msra.mxu0 0.0
  %709 = vmatprep.mubr.f32.mxu0 0.0
  %710 = vmatmul.mubr.f32.gmra.mrb[0].mxu0 %v97
  %v711 = vpop.f32.mrb[0].mxu0
  %v712 = vadd.f32 0.0, %v711
  %v713 = vpop.f32.mrb[0].mxu0
  %v714 = vadd.f32 0.0, %v713
  %715 = vdwg.mxu0
  %v716 = vadd.f32 %v215, %v217
  %v717 = vadd.f32 %v716, %v286
  %v718 = vadd.f32 %v717, %v288
  %v719 = vadd.f32 %v718, %v357
  %v720 = vadd.f32 %v719, %v359
  %v721 = vadd.f32 %v720, %v428
  %v722 = vadd.f32 %v721, %v430
  %v723 = vadd.f32 %v722, %v499
  %v724 = vadd.f32 %v723, %v501
  %v725 = vadd.f32 %v724, %v570
  %v726 = vadd.f32 %v725, %v572
  %v727 = vadd.f32 %v726, %v641
  %v728 = vadd.f32 %v727, %v643
  %v729 = vadd.f32 %v728, %v712
  %v730 = vadd.f32 %v729, %v714
  %731 = vadd.xlane.f32.xlu0 %v730
  %v732 = vpop.xlane.xlu0 %731
  %v733 = vmul.f32 %v732, 0.00048828125
  %v734 = vsub.f32 %v215, %v733
  %v735 = vsub.f32 %v217, %v733
  %v736 = vsub.f32 %v286, %v733
  %v737 = vsub.f32 %v288, %v733
  %v738 = vsub.f32 %v357, %v733
  %v739 = vsub.f32 %v359, %v733
  %v740 = vsub.f32 %v428, %v733
  %v741 = vsub.f32 %v430, %v733
  %v742 = vsub.f32 %v499, %v733
  %v743 = vsub.f32 %v501, %v733
  %v744 = vsub.f32 %v570, %v733
  %v745 = vsub.f32 %v572, %v733
  %v746 = vsub.f32 %v641, %v733
  %v747 = vsub.f32 %v643, %v733
  %v748 = vsub.f32 %v712, %v733
  %v749 = vsub.f32 %v714, %v733
  %v750 = vmul.f32 %v734, %v734
  %v751 = vmul.f32 %v735, %v735
  %v752 = vmul.f32 %v736, %v736
  %v753 = vmul.f32 %v737, %v737
  %v754 = vmul.f32 %v738, %v738
  %v755 = vmul.f32 %v739, %v739
  %v756 = vmul.f32 %v740, %v740
  %v757 = vmul.f32 %v741, %v741
  %v758 = vmul.f32 %v742, %v742
  %v759 = vmul.f32 %v743, %v743
  %v760 = vmul.f32 %v744, %v744
  %v761 = vmul.f32 %v745, %v745
  %v762 = vmul.f32 %v746, %v746
  %v763 = vmul.f32 %v747, %v747
  %v764 = vmul.f32 %v748, %v748
  %v765 = vmul.f32 %v749, %v749
  %v766 = vadd.f32 %v750, %v751
  %v767 = vadd.f32 %v766, %v752
  %v768 = vadd.f32 %v767, %v753
  %v769 = vadd.f32 %v768, %v754
  %v770 = vadd.f32 %v769, %v755
  %v771 = vadd.f32 %v770, %v756
  %v772 = vadd.f32 %v771, %v757
  %v773 = vadd.f32 %v772, %v758
  %v774 = vadd.f32 %v773, %v759
  %v775 = vadd.f32 %v774, %v760
  %v776 = vadd.f32 %v775, %v761
  %v777 = vadd.f32 %v776, %v762
  %v778 = vadd.f32 %v777, %v763
  %v779 = vadd.f32 %v778, %v764
  %v780 = vadd.f32 %v779, %v765
  %781 = vadd.xlane.f32.xlu0 %v780
  %v782 = vpop.xlane.xlu0 %781
  %v783 = vmul.f32 %v782, 0.00048828125
  %v784 = vld [vmem:[%s2] sm:$0xff]
  %v785 = vadd.f32 %v783, 1e-05
  %v786 = vrsqrt.pop %v785
  %v787 = vmul.f32 %v786, %v784
  %789 = vset.pattern.permute.xlu0 0
  %790 = vperm.xlu0 %789, %v787
  %v791 = vpop.permute.xlu0 %790
  %v793 = vmul.f32 %v734, %v791
  %v794 = vmul.f32 %v735, %v791
  %v795 = vmul.f32 %v736, %v791
  %v796 = vmul.f32 %v737, %v791
  %v797 = vmul.f32 %v738, %v791
  %v798 = vmul.f32 %v739, %v791
  %v799 = vmul.f32 %v740, %v791
  %v800 = vmul.f32 %v741, %v791
  %v801 = vmul.f32 %v742, %v791
  %v802 = vmul.f32 %v743, %v791
  %v803 = vmul.f32 %v744, %v791
  %v804 = vmul.f32 %v745, %v791
  %v805 = vmul.f32 %v746, %v791
  %v806 = vmul.f32 %v747, %v791
  %v807 = vmul.f32 %v748, %v791
  %v808 = vmul.f32 %v749, %v791
  %810 = vset.pattern.permute.xlu0 1
  %811 = vperm.xlu0 %810, %v784
  %v812 = vpop.permute.xlu0 %811
  %v814 = vadd.f32 %v793, %v812
  %v815 = vadd.f32 %v794, %v812
  %v816 = vadd.f32 %v795, %v812
  %v817 = vadd.f32 %v796, %v812
  %v818 = vadd.f32 %v797, %v812
  %v819 = vadd.f32 %v798, %v812
  %v820 = vadd.f32 %v799, %v812
  %v821 = vadd.f32 %v800, %v812
  %v822 = vadd.f32 %v801, %v812
  %v823 = vadd.f32 %v802, %v812
  %v824 = vadd.f32 %v803, %v812
  %v825 = vadd.f32 %v804, %v812
  %v826 = vadd.f32 %v805, %v812
  %v827 = vadd.f32 %v806, %v812
  %v828 = vadd.f32 %v807, %v812
  %v829 = vadd.f32 %v808, %v812
  %v830 = vmax.f32 %v814, 0.0
  %v831 = vmax.f32 %v815, 0.0
  %v832 = vmax.f32 %v816, 0.0
  %v833 = vmax.f32 %v817, 0.0
  %v834 = vmax.f32 %v818, 0.0
  %v835 = vmax.f32 %v819, 0.0
  %v836 = vmax.f32 %v820, 0.0
  %v837 = vmax.f32 %v821, 0.0
  %v838 = vmax.f32 %v822, 0.0
  %v839 = vmax.f32 %v823, 0.0
  %v840 = vmax.f32 %v824, 0.0
  %v841 = vmax.f32 %v825, 0.0
  %v842 = vmax.f32 %v826, 0.0
  %v843 = vmax.f32 %v827, 0.0
  %v844 = vmax.f32 %v828, 0.0
  %v845 = vmax.f32 %v829, 0.0
  %846 = vst [vmem:[%s3] sm:$0xff] %v830
  %847 = vst [vmem:[%s3 + $0x8] sm:$0xff] %v831
  %848 = vst [vmem:[%s3 + $0x10] sm:$0xff] %v832
  %849 = vst [vmem:[%s3 + $0x18] sm:$0xff] %v833
  %850 = vst [vmem:[%s3 + $0x20] sm:$0xff] %v834
  %851 = vst [vmem:[%s3 + $0x28] sm:$0xff] %v835
  %852 = vst [vmem:[%s3 + $0x30] sm:$0xff] %v836
  %853 = vst [vmem:[%s3 + $0x38] sm:$0xff] %v837
  %854 = vst [vmem:[%s3 + $0x40] sm:$0xff] %v838
  %855 = vst [vmem:[%s3 + $0x48] sm:$0xff] %v839
  %856 = vst [vmem:[%s3 + $0x50] sm:$0xff] %v840
  %857 = vst [vmem:[%s3 + $0x58] sm:$0xff] %v841
  %858 = vst [vmem:[%s3 + $0x60] sm:$0xff] %v842
  %859 = vst [vmem:[%s3 + $0x68] sm:$0xff] %v843
  %860 = vst [vmem:[%s3 + $0x70] sm:$0xff] %v844
  %861 = vst [vmem:[%s3 + $0x78] sm:$0xff] %v845
  // Predicated region
  $region14: #{deconv_block_forward.1} parent=0 // pred_check
    _
  $region15: #{deconv_block_forward.1} parent=0 // pred_check_branch
    %863 = sbr.rel (0) target = $region17
  $region16: #{deconv_block_forward.1} parent=0 // pred_region
    _
  $region17: #{deconv_block_forward.1} parent=0 // pred_fallthru
    _
  // Predicated region
  $region18: #{deconv_block_forward.1} parent=0 // pred_check
    _
  $region19: #{deconv_block_forward.1} parent=0 // pred_check_branch
    %865 = sbr.rel (0) target = $region21
  $region20: #{deconv_block_forward.1} parent=0 // pred_region
    _
  $region21: #{deconv_block_forward.1} parent=0 // pred_fallthru
    _

</llo_original>
